<compile_context>
chip_gen: v6e
topology: v6e:2x2x1
jax: 0.10.0
libtpu: 0.0.40
codegen_flags: <defaults>
</compile_context>

<pallas_src>
import functools
import math

import jax
import jax.numpy as jnp
from jax.experimental import pallas as pl
from jax.experimental.pallas import tpu as pltpu


# ----------------------------------------------------------------------------- helpers

def _pick_tile(n, max_tile):
    """Largest multiple of 128 that divides n (capped at max_tile); else the full axis."""
    if n % 128 != 0:
        return n
    t = (min(max_tile, n) // 128) * 128
    while n % t != 0:
        t -= 128
    return t


# ----------------------------------------------------------------------------- kernels

def _edgeconv_fused_kernel(xc_ref, xall_ref, x2_ref, w1n_ref, w1c_ref, b1_ref,
                           w2_ref, b2_ref, o_ref, *, K):
    # xc_ref  : (1, C, T)   query-point tile          xall_ref: (1, C, N) full cloud (resident)
    # x2_ref  : (1, 1, N)   precomputed ||xj||^2      w1n/w1c : (C1, C)   conv1 (BN folded)
    # b1      : (C1, 1)     w2: (C2, C1)  b2: (C2, 1) o_ref   : (1, C2, T)
    xc = xc_ref[0]                                                    # (C, T) f32
    xa = xall_ref[0]                                                  # (C, N) f32
    sqa = x2_ref[0]                                                   # (1, N) f32
    T = xc.shape[1]
    N = xa.shape[1]

    # ---- KNN score (stays in VMEM).  -||xi-xj||^2 = 2 xi.xj - ||xi||^2 - ||xj||^2 ;
    # the per-row constant ||xi||^2 is dropped (it cannot change the per-row top-K ranking).
    inner = jax.lax.dot_general(xc, xa, (((0,), (0,)), ((), ())),
                                preferred_element_type=jnp.float32)   # (T, N)
    score = 2.0 * inner - sqa                                         # (T, N)

    # ---- conv1: project once per cloud, gather the projected features per neighbor
    # (linear layer => gather/project commute).  BN scale already folded into the weights.
    xa_bf = xa.astype(jnp.bfloat16)
    proj_bf = jax.lax.dot_general(
        w1n_ref[...].astype(jnp.bfloat16), xa_bf, (((1,), (0,)), ((), ())),
        preferred_element_type=jnp.float32).astype(jnp.bfloat16)      # (C1, N)
    ctr = jnp.dot(w1c_ref[...].astype(jnp.bfloat16), xc.astype(jnp.bfloat16),
                  preferred_element_type=jnp.float32) + b1_ref[...]   # (C1, T)

    # ---- iterative top-K selection + one-hot gather; K is small & static (unrolled).
    col = jax.lax.broadcasted_iota(jnp.int32, (T, N), 1).astype(jnp.float32)
    h_parts = []
    for _ in range(K):
        m = jnp.max(score, axis=1, keepdims=True)                     # (T, 1) row max
        hit = score >= m
        sel = jnp.min(jnp.where(hit, col, float(N)), axis=1, keepdims=True)  # first max col
        onehot = col == sel                                           # exactly one per row
        score = jnp.where(onehot, -jnp.inf, score)                    # mask for next pass
        sel_bf = jnp.where(onehot, 1.0, 0.0).astype(jnp.bfloat16)     # (T, N) selection matrix
        nbr = jax.lax.dot_general(proj_bf, sel_bf, (((1,), (1,)), ((), ())),
                                  preferred_element_type=jnp.float32)  # (C1, T) gathered proj
        h_parts.append(nbr + ctr)

    # ---- conv2 batched over the K*T lane extent (2 big MXU pushes per tile).
    h = jnp.concatenate(h_parts, axis=1)                              # (C1, K*T)
    h = jnp.maximum(h, 0.2 * h)                                       # LeakyReLU(0.2)
    h2 = jnp.dot(w2_ref[...].astype(jnp.bfloat16), h.astype(jnp.bfloat16),
                 preferred_element_type=jnp.float32) + b2_ref[...]    # (C2, K*T)
    h2 = jnp.maximum(h2, 0.2 * h2)

    acc = h2[:, :T]                                                   # max over the K neighbors
    for k in range(1, K):
        acc = jnp.maximum(acc, h2[:, k * T:(k + 1) * T])
    o_ref[0] = acc


def _ds_colsum_kernel(xq_ref, xa_ref, wq_ref, wk_ref, colsum_ref):
    # Kernel 1 of DownSample: only the softmax column-sum leaves the kernel.
    # xq_ref: (1, C, TQ) query tile ; xa_ref: (1, C, N) full (resident) ; w*: (1, C, d)
    # colsum_ref: (1, 1, 1, N) accumulated across query tiles (grid axis 2, "arbitrary").
    @pl.when(pl.program_id(2) == 0)
    def _():
        colsum_ref[...] = jnp.zeros_like(colsum_ref)

    xq = xq_ref[0].astype(jnp.bfloat16)                               # (C, TQ)
    xa = xa_ref[0].astype(jnp.bfloat16)                               # (C, N)
    q = jax.lax.dot_general(wq_ref[0].astype(jnp.bfloat16), xq, (((0,), (0,)), ((), ())),
                            preferred_element_type=jnp.float32)       # (dq, TQ)
    k = jax.lax.dot_general(wk_ref[0].astype(jnp.bfloat16), xa, (((0,), (0,)), ((), ())),
                            preferred_element_type=jnp.float32)       # (dk, N)
    dq = q.shape[0]
    energy = jax.lax.dot_general(q.astype(jnp.bfloat16), k.astype(jnp.bfloat16),
                                 (((0,), (0,)), ((), ())),
                                 preferred_element_type=jnp.float32)  # (TQ, N)
    energy = energy * (1.0 / math.sqrt(dq))
    m = jnp.max(energy, axis=-1, keepdims=True)
    e = jnp.exp(energy - m)
    attn = e * pl.reciprocal(jnp.sum(e, axis=-1, keepdims=True), approx=True)
    colsum_ref[0, 0] += jnp.sum(attn, axis=0, keepdims=True)          # sum over dim=-2


def _ds_attnrows_v_kernel(xsel_ref, xa_ref, wq_ref, wk_ref, wv_ref, o_ref):
    # Kernel 2: recompute attention rows for the M selected queries only (flash-style) and
    # apply @ V; k/v are recomputed from x (cheaper than an HBM round trip of k/v).
    # xsel: (1, 1, C, M) ; xa: (1, C, N) ; w*: (1, C, d) ; o: (1, 1, dv, M) lane-dense on M.
    xs = xsel_ref[0, 0].astype(jnp.bfloat16)                          # (C, M)
    xa = xa_ref[0].astype(jnp.bfloat16)                               # (C, N)
    q = jax.lax.dot_general(wq_ref[0].astype(jnp.bfloat16), xs, (((0,), (0,)), ((), ())),
                            preferred_element_type=jnp.float32)       # (dq, M)
    k = jax.lax.dot_general(wk_ref[0].astype(jnp.bfloat16), xa, (((0,), (0,)), ((), ())),
                            preferred_element_type=jnp.float32)       # (dk, N)
    v = jax.lax.dot_general(wv_ref[0].astype(jnp.bfloat16), xa, (((0,), (0,)), ((), ())),
                            preferred_element_type=jnp.float32)       # (dv, N)
    dq = q.shape[0]
    energy = jax.lax.dot_general(q.astype(jnp.bfloat16), k.astype(jnp.bfloat16),
                                 (((0,), (0,)), ((), ())),
                                 preferred_element_type=jnp.float32)  # (M, N)
    energy = energy * (1.0 / math.sqrt(dq))
    m = jnp.max(energy, axis=-1, keepdims=True)
    e = jnp.exp(energy - m)
    attn = e * pl.reciprocal(jnp.sum(e, axis=-1, keepdims=True), approx=True)
    # out (dv, M) = V (dv, N) contracted with attn (M, N) over N -> lane-dense store on M.
    o_ref[0, 0] = jax.lax.dot_general(v.astype(jnp.bfloat16), attn.astype(jnp.bfloat16),
                                      (((1,), (1,)), ((), ())),
                                      preferred_element_type=jnp.float32)


# ----------------------------------------------------------------------------- pallas wrappers

def edgeconv_apply(x, p, K):
    """Fused EdgeConv forward: x (B, C, N) -> (B, C2, N).  Everything stays in VMEM."""
    B, C, N = x.shape
    C1 = p["w1nt"].shape[0]
    C2 = p["w2t"].shape[0]
    # T <= 256 keeps (score + per-k one-hot + batched conv2 activations) well under the v7x
    # 32 MiB scoped-VMEM default at realistic N; tiny shapes fall back to the full axis.
    T = _pick_tile(N, 256)
    x2 = jnp.sum(x * x, axis=1, keepdims=True)                        # (B, 1, N) key norms

    kernel = functools.partial(_edgeconv_fused_kernel, K=K)
    return pl.pallas_call(
        kernel,
        out_shape=jax.ShapeDtypeStruct((B, C2, N), jnp.float32),
        grid=(B, N // T),
        in_specs=[
            pl.BlockSpec((1, C, T), lambda b, t: (b, 0, t)),          # query tile
            pl.BlockSpec((1, C, N), lambda b, t: (b, 0, 0)),          # full cloud (resident)
            pl.BlockSpec((1, 1, N), lambda b, t: (b, 0, 0)),          # ||xj||^2 (resident)
            pl.BlockSpec((C1, C), lambda b, t: (0, 0)),
            pl.BlockSpec((C1, C), lambda b, t: (0, 0)),
            pl.BlockSpec((C1, 1), lambda b, t: (0, 0)),
            pl.BlockSpec((C2, C1), lambda b, t: (0, 0)),
            pl.BlockSpec((C2, 1), lambda b, t: (0, 0)),
        ],
        out_specs=pl.BlockSpec((1, C2, T), lambda b, t: (b, 0, t)),
        compiler_params=pltpu.CompilerParams(
            dimension_semantics=("parallel", "parallel")),
    )(x, x, x2, p["w1nt"], p["w1ct"], p["b1"], p["w2t"], p["b2"])


def downsample_apply(x, p, M):
    """DownSample ('global') forward: x (B, C, N) -> (B, v_out, M), idx (B, H, M)."""
    B, C, N = x.shape
    H, _, dq = p["wq"].shape
    dk = p["wk"].shape[2]
    dv = p["wv"].shape[2]
    TQ = _pick_tile(N, 512)

    # Kernel 1: attention column-sum only; the (TQ, N) energy/exp slabs never leave VMEM and
    # the full (N, N) attention is never materialized anywhere.
    colsum = pl.pallas_call(
        _ds_colsum_kernel,
        out_shape=jax.ShapeDtypeStruct((B, H, 1, N), jnp.float32),
        grid=(B, H, N // TQ),
        in_specs=[
            pl.BlockSpec((1, C, TQ), lambda b, h, t: (b, 0, t)),
            pl.BlockSpec((1, C, N), lambda b, h, t: (b, 0, 0)),
            pl.BlockSpec((1, C, dq), lambda b, h, t: (h, 0, 0)),
            pl.BlockSpec((1, C, dk), lambda b, h, t: (h, 0, 0)),
        ],
        out_specs=pl.BlockSpec((1, 1, 1, N), lambda b, h, t: (b, h, 0, 0)),
        compiler_params=pltpu.CompilerParams(
            dimension_semantics=("parallel", "parallel", "arbitrary")),
    )(x, x, p["wq"], p["wk"])

    idx = jax.lax.top_k(colsum[:, :, 0, :], M)[1]                     # (B, H, M) data-dependent
    # Tiny gather of the M selected query points (C x M per head) - stays in XLA.
    xsel = jax.vmap(jax.vmap(lambda xb, ib: xb[:, ib], in_axes=(None, 0)))(x, idx)  # (B,H,C,M)

    # Kernel 2: recompute attention rows for the selected queries + @V (fused, channel-first).
    v_down = pl.pallas_call(
        _ds_attnrows_v_kernel,
        out_shape=jax.ShapeDtypeStruct((B, H, dv, M), jnp.float32),
        grid=(B, H),
        in_specs=[
            pl.BlockSpec((1, 1, C, M), lambda b, h: (b, h, 0, 0)),
            pl.BlockSpec((1, C, N), lambda b, h: (b, 0, 0)),
            pl.BlockSpec((1, C, dq), lambda b, h: (h, 0, 0)),
            pl.BlockSpec((1, C, dk), lambda b, h: (h, 0, 0)),
            pl.BlockSpec((1, C, dv), lambda b, h: (h, 0, 0)),
        ],
        out_specs=pl.BlockSpec((1, 1, dv, M), lambda b, h: (b, h, 0, 0)),
        compiler_params=pltpu.CompilerParams(
            dimension_semantics=("parallel", "parallel")),
    )(xsel, x, p["wq"], p["wk"], p["wv"])

    # (B, H, dv, M) -> (B, H*dv, M): head-major channel order matches the reference reshape.
    # TODO(synk): the (v_dropped, idx_dropped) branch is not computed - EdgeConvBlock only
    # consumes (v_down, idx).
    return v_down.reshape(B, H * dv, M), idx


def edgeconv_block_forward(x, params):
    """Full EdgeConvBlock forward. x: (B, 3, N) -> (B, Cout, M_last)."""
    x_list = []
    for emb_p, emb_k in zip(params["embedding"], params["embedding_K"]):
        x = edgeconv_apply(x, emb_p, emb_k)
        x_list.append(x)
    x = jnp.concatenate(x_list, axis=1)
    x = edgeconv_apply(x, params["edgeconv"][0], params["edgeconv_K"][0])
    for i, (ds_p, ds_m) in enumerate(zip(params["downsample"], params["downsample_M"])):
        x, _ = downsample_apply(x, ds_p, ds_m)
        x = edgeconv_apply(x, params["edgeconv"][i + 1], params["edgeconv_K"][i + 1])
    return x


# ----------------------------------------------------------------------------- param init

def _bn_fold(key, c, eps=1e-5):
    """Eval-mode BatchNorm folded to per-channel scale / bias."""
    gamma = 1.0 + 0.1 * jax.random.normal(key, (c,), jnp.float32)
    beta = 0.05 * jnp.arange(c, dtype=jnp.float32)
    running_mean = jnp.zeros((c,), jnp.float32)
    running_var = jnp.ones((c,), jnp.float32)
    s = gamma / jnp.sqrt(running_var + eps)
    b = beta - running_mean * s
    return s, b


def init_edgeconv_params(key, c1_in, c1_out, c2_in, c2_out):
    """Init raw conv/BN params and fold them into the kernel-ready channel-first layout.

    Edge feature channel order (matching ops.group 'center_diff'): [neighbor - center, center].
    BN scale is folded into the transposed weights; only the bias survives in-kernel.
    """
    k1, k2, k3, k4 = jax.random.split(key, 4)
    w1 = 0.3 * jax.random.normal(k1, (c1_in, c1_out), jnp.float32)   # (2C, C1)
    w2 = 0.3 * jax.random.normal(k2, (c2_in, c2_out), jnp.float32)   # (C1, C2)
    s1, b1 = _bn_fold(k3, c1_out)
    s2, b2 = _bn_fold(k4, c2_out)

    c = c1_in // 2
    w1a, w1b = w1[:c], w1[c:]                                        # diff / center halves
    # w1^T [nbr - ctr; ctr] = (w1a^T) nbr + (w1b - w1a)^T ctr
    w1nt = s1[:, None] * w1a.T                                       # (C1, C)
    w1ct = s1[:, None] * (w1b - w1a).T                               # (C1, C)
    w2t = s2[:, None] * w2.T                                         # (C2, C1)
    return dict(w1nt=w1nt, w1ct=w1ct, b1=b1[:, None], w2t=w2t, b2=b2[:, None])


def init_downsample_params(key, c_in, q_out, k_out, v_out, heads):
    kq, kk, kv = jax.random.split(key, 3)
    return dict(
        wq=0.3 * jax.random.normal(kq, (heads, c_in, q_out // heads), jnp.float32),
        wk=0.3 * jax.random.normal(kk, (heads, c_in, k_out // heads), jnp.float32),
        wv=0.3 * jax.random.normal(kv, (heads, c_in, v_out // heads), jnp.float32),
    )


# ----------------------------------------------------------------------------- main

if __name__ == "__main__":
    # Small, consistent configuration of EdgeConvBlock (downsample_which='global'):
    #   embedding : 1x EdgeConv(K=4, 6 -> 8 -> 8)
    #   edgeconv0 : EdgeConv(K=4, 16 -> 8 -> 8)
    #   downsample: DownSample(M=8, 8 -> 8, heads=1)
    #   edgeconv1 : EdgeConv(K=4, 16 -> 8 -> 8)
    B, N, C_IN = 2, 16, 3
    key = jax.random.PRNGKey(0)
    kx, ke, k0, kd, k1 = jax.random.split(key, 5)

    params = dict(
        embedding=[init_edgeconv_params(ke, 2 * C_IN, 8, 8, 8)],
        embedding_K=[4],
        edgeconv=[
            init_edgeconv_params(k0, 16, 8, 8, 8),
            init_edgeconv_params(k1, 16, 8, 8, 8),
        ],
        edgeconv_K=[4, 4],
        downsample=[init_downsample_params(kd, 8, 8, 8, 8, 1)],
        downsample_M=[8],
    )

    x = jax.random.normal(kx, (B, C_IN, N), jnp.float32)
    out = edgeconv_block_forward(x, params)
    out = jax.block_until_ready(out)
    assert out.shape == (B, 8, 8), out.shape
    assert bool(jnp.all(jnp.isfinite(out)))
    print("KERNEL_OK")
</pallas_src>

<mosaic_0001>
module attributes {stable_mosaic.version = 11 : i64} {
  func.func @_edgeconv_fused_kernel(%arg0: i32, %arg1: i32, %arg2: memref<1x3x16xf32, #tpu.memory_space<vmem>>, %arg3: memref<1x3x16xf32, #tpu.memory_space<vmem>>, %arg4: memref<1x1x16xf32, #tpu.memory_space<vmem>>, %arg5: memref<8x3xf32, #tpu.memory_space<vmem>>, %arg6: memref<8x3xf32, #tpu.memory_space<vmem>>, %arg7: memref<8x1xf32, #tpu.memory_space<vmem>>, %arg8: memref<8x8xf32, #tpu.memory_space<vmem>>, %arg9: memref<8x1xf32, #tpu.memory_space<vmem>>, %arg10: memref<1x8x16xf32, #tpu.memory_space<vmem>>) attributes {dimension_semantics = [#tpu.dimension_semantics<parallel>, #tpu.dimension_semantics<parallel>], iteration_bounds = array<i64: 2, 1>, scalar_prefetch = 0 : i64, scratch_operands = 0 : i64, tpu.core_type = #tpu.core_type<tc>, window_params = [{transform_indices = @transform_0, window_bounds = array<i64: 1, 3, 16>}, {transform_indices = @transform_1, window_bounds = array<i64: 1, 3, 16>}, {transform_indices = @transform_2, window_bounds = array<i64: 1, 1, 16>}, {pipeline_mode = #tpu.pipeline_mode<synchronous>, transform_indices = @transform_3, window_bounds = array<i64: 8, 3>}, {pipeline_mode = #tpu.pipeline_mode<synchronous>, transform_indices = @transform_4, window_bounds = array<i64: 8, 3>}, {pipeline_mode = #tpu.pipeline_mode<synchronous>, transform_indices = @transform_5, window_bounds = array<i64: 8, 1>}, {pipeline_mode = #tpu.pipeline_mode<synchronous>, transform_indices = @transform_6, window_bounds = array<i64: 8, 8>}, {pipeline_mode = #tpu.pipeline_mode<synchronous>, transform_indices = @transform_7, window_bounds = array<i64: 8, 1>}, {transform_indices = @transform_8, window_bounds = array<i64: 1, 8, 16>}]} {
    %c0 = arith.constant 0 : index
    %c0_0 = arith.constant 0 : index
    %c0_1 = arith.constant 0 : index
    %0 = vector.load %arg2[%c0, %c0_0, %c0_1] : memref<1x3x16xf32, #tpu.memory_space<vmem>>, vector<1x3x16xf32>
    %1 = vector.shape_cast %0 : vector<1x3x16xf32> to vector<3x16xf32>
    %c0_2 = arith.constant 0 : index
    %c0_3 = arith.constant 0 : index
    %c0_4 = arith.constant 0 : index
    %2 = vector.load %arg3[%c0_2, %c0_3, %c0_4] : memref<1x3x16xf32, #tpu.memory_space<vmem>>, vector<1x3x16xf32>
    %3 = vector.shape_cast %2 : vector<1x3x16xf32> to vector<3x16xf32>
    %c0_5 = arith.constant 0 : index
    %c0_6 = arith.constant 0 : index
    %c0_7 = arith.constant 0 : index
    %4 = vector.load %arg4[%c0_5, %c0_6, %c0_7] : memref<1x1x16xf32, #tpu.memory_space<vmem>>, vector<1x1x16xf32>
    %5 = vector.shape_cast %4 : vector<1x1x16xf32> to vector<1x16xf32>
    %cst = arith.constant dense<0.000000e+00> : vector<16x16xf32>
    %6 = tpu.matmul %1, %3, %cst {dimension_numbers = #tpu.dot_dimension_numbers<[0], [0], [1], [1], [0, 1, 1, 1], [], []>} : vector<3x16xf32>, vector<3x16xf32>, vector<16x16xf32> -> vector<16x16xf32>
    %cst_8 = arith.constant 2.000000e+00 : f32
    %7 = vector.broadcast %cst_8 : f32 to vector<16x16xf32>
    %8 = arith.mulf %7, %6 : vector<16x16xf32>
    %9 = vector.broadcast %5 : vector<1x16xf32> to vector<16x16xf32>
    %10 = arith.subf %8, %9 : vector<16x16xf32>
    %11 = arith.truncf %3 : vector<3x16xf32> to vector<3x16xbf16>
    %c0_9 = arith.constant 0 : index
    %c0_10 = arith.constant 0 : index
    %12 = vector.load %arg5[%c0_9, %c0_10] : memref<8x3xf32, #tpu.memory_space<vmem>>, vector<8x3xf32>
    %13 = arith.truncf %12 : vector<8x3xf32> to vector<8x3xbf16>
    %cst_11 = arith.constant dense<0.000000e+00> : vector<8x16xf32>
    %14 = tpu.matmul %13, %11, %cst_11 {dimension_numbers = #tpu.dot_dimension_numbers<[1], [0], [0], [1], [0, 0, 1, 1], [], []>} : vector<8x3xbf16>, vector<3x16xbf16>, vector<8x16xf32> -> vector<8x16xf32>
    %15 = arith.truncf %14 : vector<8x16xf32> to vector<8x16xbf16>
    %c0_12 = arith.constant 0 : index
    %c0_13 = arith.constant 0 : index
    %16 = vector.load %arg6[%c0_12, %c0_13] : memref<8x3xf32, #tpu.memory_space<vmem>>, vector<8x3xf32>
    %17 = arith.truncf %16 : vector<8x3xf32> to vector<8x3xbf16>
    %18 = arith.truncf %1 : vector<3x16xf32> to vector<3x16xbf16>
    %cst_14 = arith.constant dense<0.000000e+00> : vector<8x16xf32>
    %19 = tpu.matmul %17, %18, %cst_14 {dimension_numbers = #tpu.dot_dimension_numbers<[1], [0], [0], [1], [0, 0, 1, 1], [], []>} : vector<8x3xbf16>, vector<3x16xbf16>, vector<8x16xf32> -> vector<8x16xf32>
    %c0_15 = arith.constant 0 : index
    %c0_16 = arith.constant 0 : index
    %20 = vector.load %arg7[%c0_15, %c0_16] : memref<8x1xf32, #tpu.memory_space<vmem>>, vector<8x1xf32>
    %21 = vector.broadcast %20 : vector<8x1xf32> to vector<8x16xf32>
    %22 = arith.addf %19, %21 : vector<8x16xf32>
    %23 = tpu.iota {dimensions = array<i32: 1>} : vector<16x16xi32>
    %24 = arith.sitofp %23 : vector<16x16xi32> to vector<16x16xf32>
    %cst_17 = arith.constant dense<0xFF800000> : vector<16xf32>
    %25 = vector.multi_reduction <maximumf>, %10, %cst_17 [1] : vector<16x16xf32> to vector<16xf32>
    %26 = vector.shape_cast %25 : vector<16xf32> to vector<16x1xf32>
    %27 = vector.broadcast %26 : vector<16x1xf32> to vector<16x16xf32>
    %28 = arith.cmpf oge, %10, %27 : vector<16x16xf32>
    %cst_18 = arith.constant 1.600000e+01 : f32
    %29 = vector.broadcast %cst_18 : f32 to vector<16x16xf32>
    %30 = arith.select %28, %24, %29 : vector<16x16xi1>, vector<16x16xf32>
    %cst_19 = arith.constant dense<0x7F800000> : vector<16xf32>
    %31 = vector.multi_reduction <minimumf>, %30, %cst_19 [1] : vector<16x16xf32> to vector<16xf32>
    %32 = vector.shape_cast %31 : vector<16xf32> to vector<16x1xf32>
    %33 = vector.broadcast %32 : vector<16x1xf32> to vector<16x16xf32>
    %34 = arith.cmpf oeq, %24, %33 : vector<16x16xf32>
    %cst_20 = arith.constant 0xFF800000 : f32
    %35 = vector.broadcast %cst_20 : f32 to vector<16x16xf32>
    %36 = arith.select %34, %35, %10 : vector<16x16xi1>, vector<16x16xf32>
    %cst_21 = arith.constant 1.000000e+00 : f32
    %cst_22 = arith.constant 0.000000e+00 : f32
    %37 = vector.broadcast %cst_21 : f32 to vector<16x16xf32>
    %38 = vector.broadcast %cst_22 : f32 to vector<16x16xf32>
    %39 = arith.select %34, %37, %38 : vector<16x16xi1>, vector<16x16xf32>
    %40 = arith.truncf %39 : vector<16x16xf32> to vector<16x16xbf16>
    %cst_23 = arith.constant dense<0.000000e+00> : vector<8x16xf32>
    %41 = tpu.matmul %15, %40, %cst_23 {dimension_numbers = #tpu.dot_dimension_numbers<[1], [1], [0], [0], [0, 0, 1, 0], [], []>} : vector<8x16xbf16>, vector<16x16xbf16>, vector<8x16xf32> -> vector<8x16xf32>
    %42 = arith.addf %41, %22 : vector<8x16xf32>
    %cst_24 = arith.constant dense<0xFF800000> : vector<16xf32>
    %43 = vector.multi_reduction <maximumf>, %36, %cst_24 [1] : vector<16x16xf32> to vector<16xf32>
    %44 = vector.shape_cast %43 : vector<16xf32> to vector<16x1xf32>
    %45 = vector.broadcast %44 : vector<16x1xf32> to vector<16x16xf32>
    %46 = arith.cmpf oge, %36, %45 : vector<16x16xf32>
    %cst_25 = arith.constant 1.600000e+01 : f32
    %47 = vector.broadcast %cst_25 : f32 to vector<16x16xf32>
    %48 = arith.select %46, %24, %47 : vector<16x16xi1>, vector<16x16xf32>
    %cst_26 = arith.constant dense<0x7F800000> : vector<16xf32>
    %49 = vector.multi_reduction <minimumf>, %48, %cst_26 [1] : vector<16x16xf32> to vector<16xf32>
    %50 = vector.shape_cast %49 : vector<16xf32> to vector<16x1xf32>
    %51 = vector.broadcast %50 : vector<16x1xf32> to vector<16x16xf32>
    %52 = arith.cmpf oeq, %24, %51 : vector<16x16xf32>
    %cst_27 = arith.constant 0xFF800000 : f32
    %53 = vector.broadcast %cst_27 : f32 to vector<16x16xf32>
    %54 = arith.select %52, %53, %36 : vector<16x16xi1>, vector<16x16xf32>
    %cst_28 = arith.constant 1.000000e+00 : f32
    %cst_29 = arith.constant 0.000000e+00 : f32
    %55 = vector.broadcast %cst_28 : f32 to vector<16x16xf32>
    %56 = vector.broadcast %cst_29 : f32 to vector<16x16xf32>
    %57 = arith.select %52, %55, %56 : vector<16x16xi1>, vector<16x16xf32>
    %58 = arith.truncf %57 : vector<16x16xf32> to vector<16x16xbf16>
    %cst_30 = arith.constant dense<0.000000e+00> : vector<8x16xf32>
    %59 = tpu.matmul %15, %58, %cst_30 {dimension_numbers = #tpu.dot_dimension_numbers<[1], [1], [0], [0], [0, 0, 1, 0], [], []>} : vector<8x16xbf16>, vector<16x16xbf16>, vector<8x16xf32> -> vector<8x16xf32>
    %60 = arith.addf %59, %22 : vector<8x16xf32>
    %cst_31 = arith.constant dense<0xFF800000> : vector<16xf32>
    %61 = vector.multi_reduction <maximumf>, %54, %cst_31 [1] : vector<16x16xf32> to vector<16xf32>
    %62 = vector.shape_cast %61 : vector<16xf32> to vector<16x1xf32>
    %63 = vector.broadcast %62 : vector<16x1xf32> to vector<16x16xf32>
    %64 = arith.cmpf oge, %54, %63 : vector<16x16xf32>
    %cst_32 = arith.constant 1.600000e+01 : f32
    %65 = vector.broadcast %cst_32 : f32 to vector<16x16xf32>
    %66 = arith.select %64, %24, %65 : vector<16x16xi1>, vector<16x16xf32>
    %cst_33 = arith.constant dense<0x7F800000> : vector<16xf32>
    %67 = vector.multi_reduction <minimumf>, %66, %cst_33 [1] : vector<16x16xf32> to vector<16xf32>
    %68 = vector.shape_cast %67 : vector<16xf32> to vector<16x1xf32>
    %69 = vector.broadcast %68 : vector<16x1xf32> to vector<16x16xf32>
    %70 = arith.cmpf oeq, %24, %69 : vector<16x16xf32>
    %cst_34 = arith.constant 0xFF800000 : f32
    %71 = vector.broadcast %cst_34 : f32 to vector<16x16xf32>
    %72 = arith.select %70, %71, %54 : vector<16x16xi1>, vector<16x16xf32>
    %cst_35 = arith.constant 1.000000e+00 : f32
    %cst_36 = arith.constant 0.000000e+00 : f32
    %73 = vector.broadcast %cst_35 : f32 to vector<16x16xf32>
    %74 = vector.broadcast %cst_36 : f32 to vector<16x16xf32>
    %75 = arith.select %70, %73, %74 : vector<16x16xi1>, vector<16x16xf32>
    %76 = arith.truncf %75 : vector<16x16xf32> to vector<16x16xbf16>
    %cst_37 = arith.constant dense<0.000000e+00> : vector<8x16xf32>
    %77 = tpu.matmul %15, %76, %cst_37 {dimension_numbers = #tpu.dot_dimension_numbers<[1], [1], [0], [0], [0, 0, 1, 0], [], []>} : vector<8x16xbf16>, vector<16x16xbf16>, vector<8x16xf32> -> vector<8x16xf32>
    %78 = arith.addf %77, %22 : vector<8x16xf32>
    %cst_38 = arith.constant dense<0xFF800000> : vector<16xf32>
    %79 = vector.multi_reduction <maximumf>, %72, %cst_38 [1] : vector<16x16xf32> to vector<16xf32>
    %80 = vector.shape_cast %79 : vector<16xf32> to vector<16x1xf32>
    %81 = vector.broadcast %80 : vector<16x1xf32> to vector<16x16xf32>
    %82 = arith.cmpf oge, %72, %81 : vector<16x16xf32>
    %cst_39 = arith.constant 1.600000e+01 : f32
    %83 = vector.broadcast %cst_39 : f32 to vector<16x16xf32>
    %84 = arith.select %82, %24, %83 : vector<16x16xi1>, vector<16x16xf32>
    %cst_40 = arith.constant dense<0x7F800000> : vector<16xf32>
    %85 = vector.multi_reduction <minimumf>, %84, %cst_40 [1] : vector<16x16xf32> to vector<16xf32>
    %86 = vector.shape_cast %85 : vector<16xf32> to vector<16x1xf32>
    %87 = vector.broadcast %86 : vector<16x1xf32> to vector<16x16xf32>
    %88 = arith.cmpf oeq, %24, %87 : vector<16x16xf32>
    %cst_41 = arith.constant 1.000000e+00 : f32
    %cst_42 = arith.constant 0.000000e+00 : f32
    %89 = vector.broadcast %cst_41 : f32 to vector<16x16xf32>
    %90 = vector.broadcast %cst_42 : f32 to vector<16x16xf32>
    %91 = arith.select %88, %89, %90 : vector<16x16xi1>, vector<16x16xf32>
    %92 = arith.truncf %91 : vector<16x16xf32> to vector<16x16xbf16>
    %cst_43 = arith.constant dense<0.000000e+00> : vector<8x16xf32>
    %93 = tpu.matmul %15, %92, %cst_43 {dimension_numbers = #tpu.dot_dimension_numbers<[1], [1], [0], [0], [0, 0, 1, 0], [], []>} : vector<8x16xbf16>, vector<16x16xbf16>, vector<8x16xf32> -> vector<8x16xf32>
    %94 = arith.addf %93, %22 : vector<8x16xf32>
    %95 = tpu.concatenate %42, %60, %78, %94 in 1 : vector<8x16xf32>, vector<8x16xf32>, vector<8x16xf32>, vector<8x16xf32> -> vector<8x64xf32>
    %cst_44 = arith.constant 2.000000e-01 : f32
    %96 = vector.broadcast %cst_44 : f32 to vector<8x64xf32>
    %97 = arith.mulf %96, %95 : vector<8x64xf32>
    %98 = arith.maximumf %95, %97 : vector<8x64xf32>
    %c0_45 = arith.constant 0 : index
    %c0_46 = arith.constant 0 : index
    %99 = vector.load %arg8[%c0_45, %c0_46] : memref<8x8xf32, #tpu.memory_space<vmem>>, vector<8x8xf32>
    %100 = arith.truncf %99 : vector<8x8xf32> to vector<8x8xbf16>
    %101 = arith.truncf %98 : vector<8x64xf32> to vector<8x64xbf16>
    %cst_47 = arith.constant dense<0.000000e+00> : vector<8x64xf32>
    %102 = tpu.matmul %100, %101, %cst_47 {dimension_numbers = #tpu.dot_dimension_numbers<[1], [0], [0], [1], [0, 0, 1, 1], [], []>} : vector<8x8xbf16>, vector<8x64xbf16>, vector<8x64xf32> -> vector<8x64xf32>
    %c0_48 = arith.constant 0 : index
    %c0_49 = arith.constant 0 : index
    %103 = vector.load %arg9[%c0_48, %c0_49] : memref<8x1xf32, #tpu.memory_space<vmem>>, vector<8x1xf32>
    %104 = vector.broadcast %103 : vector<8x1xf32> to vector<8x64xf32>
    %105 = arith.addf %102, %104 : vector<8x64xf32>
    %cst_50 = arith.constant 2.000000e-01 : f32
    %106 = vector.broadcast %cst_50 : f32 to vector<8x64xf32>
    %107 = arith.mulf %106, %105 : vector<8x64xf32>
    %108 = arith.maximumf %105, %107 : vector<8x64xf32>
    %109 = vector.extract_strided_slice %108 {offsets = [0, 0], sizes = [8, 16], strides = [1, 1]} : vector<8x64xf32> to vector<8x16xf32>
    %110 = vector.extract_strided_slice %108 {offsets = [0, 16], sizes = [8, 16], strides = [1, 1]} : vector<8x64xf32> to vector<8x16xf32>
    %111 = arith.maximumf %109, %110 : vector<8x16xf32>
    %112 = vector.extract_strided_slice %108 {offsets = [0, 32], sizes = [8, 16], strides = [1, 1]} : vector<8x64xf32> to vector<8x16xf32>
    %113 = arith.maximumf %111, %112 : vector<8x16xf32>
    %114 = vector.extract_strided_slice %108 {offsets = [0, 48], sizes = [8, 16], strides = [1, 1]} : vector<8x64xf32> to vector<8x16xf32>
    %115 = arith.maximumf %113, %114 : vector<8x16xf32>
    %c0_51 = arith.constant 0 : index
    %c0_52 = arith.constant 0 : index
    %c0_53 = arith.constant 0 : index
    %116 = vector.load %arg10[%c0_51, %c0_52, %c0_53] : memref<1x8x16xf32, #tpu.memory_space<vmem>>, vector<1x8x16xf32>
    %117 = vector.shape_cast %116 : vector<1x8x16xf32> to vector<8x16xf32>
    %118 = vector.shape_cast %115 : vector<8x16xf32> to vector<1x8x16xf32>
    tpu.vector_store %arg10[%c0_51, %c0_52, %c0_53], %118 {strides = array<i32>} : memref<1x8x16xf32, #tpu.memory_space<vmem>>, vector<1x8x16xf32>,
    return
  }
  func.func @transform_0(%arg0: i32, %arg1: i32) -> (i32, i32, i32) {
    %c0_i32 = arith.constant 0 : i32
    %c0_i32_0 = arith.constant 0 : i32
    return %arg0, %c0_i32, %arg1 : i32, i32, i32
  }
  func.func @transform_1(%arg0: i32, %arg1: i32) -> (i32, i32, i32) {
    %c0_i32 = arith.constant 0 : i32
    %c0_i32_0 = arith.constant 0 : i32
    %c0_i32_1 = arith.constant 0 : i32
    return %arg0, %c0_i32, %c0_i32_0 : i32, i32, i32
  }
  func.func @transform_2(%arg0: i32, %arg1: i32) -> (i32, i32, i32) {
    %c0_i32 = arith.constant 0 : i32
    %c0_i32_0 = arith.constant 0 : i32
    %c0_i32_1 = arith.constant 0 : i32
    return %arg0, %c0_i32, %c0_i32_0 : i32, i32, i32
  }
  func.func @transform_3(%arg0: i32, %arg1: i32) -> (i32, i32) {
    %c0_i32 = arith.constant 0 : i32
    %c0_i32_0 = arith.constant 0 : i32
    %c0_i32_1 = arith.constant 0 : i32
    return %c0_i32, %c0_i32_0 : i32, i32
  }
  func.func @transform_4(%arg0: i32, %arg1: i32) -> (i32, i32) {
    %c0_i32 = arith.constant 0 : i32
    %c0_i32_0 = arith.constant 0 : i32
    %c0_i32_1 = arith.constant 0 : i32
    return %c0_i32, %c0_i32_0 : i32, i32
  }
  func.func @transform_5(%arg0: i32, %arg1: i32) -> (i32, i32) {
    %c0_i32 = arith.constant 0 : i32
    %c0_i32_0 = arith.constant 0 : i32
    %c0_i32_1 = arith.constant 0 : i32
    return %c0_i32, %c0_i32_0 : i32, i32
  }
  func.func @transform_6(%arg0: i32, %arg1: i32) -> (i32, i32) {
    %c0_i32 = arith.constant 0 : i32
    %c0_i32_0 = arith.constant 0 : i32
    %c0_i32_1 = arith.constant 0 : i32
    return %c0_i32, %c0_i32_0 : i32, i32
  }
  func.func @transform_7(%arg0: i32, %arg1: i32) -> (i32, i32) {
    %c0_i32 = arith.constant 0 : i32
    %c0_i32_0 = arith.constant 0 : i32
    %c0_i32_1 = arith.constant 0 : i32
    return %c0_i32, %c0_i32_0 : i32, i32
  }
  func.func @transform_8(%arg0: i32, %arg1: i32) -> (i32, i32, i32) {
    %c0_i32 = arith.constant 0 : i32
    %c0_i32_0 = arith.constant 0 : i32
    return %arg0, %c0_i32, %arg1 : i32, i32, i32
  }
}

</mosaic_0001>

<llo_original>
// kernel: tpu_custom_call.1
$region0: #{tpu_custom_call.1}
  #allocation0 [shape = 'u32[]', space=smem, size = 0x4, offset = 0x4, fixed_abs, tag = 'smem constant byte address 0x4 - core index']
  #allocation1 [shape = 'u32[144,128]{1,0:T(1,128)}', space=vmem, size = 0x12000, scoped, tag = 'internal scratch']
  %s0 = inlined_call_operand.vmem [shape: f32[2,3,16], index: 0, kind: input, shape index: {}]
  %s1 = inlined_call_operand.vmem [shape: f32[2,3,16], index: 1, kind: input, shape index: {}]
  %s2 = inlined_call_operand.vmem [shape: f32[2,1,16], index: 2, kind: input, shape index: {}]
  %s3 = inlined_call_operand.vmem [shape: f32[8,3], index: 3, kind: input, shape index: {}]
  %s4 = inlined_call_operand.vmem [shape: f32[8,3], index: 4, kind: input, shape index: {}]
  %s5 = inlined_call_operand.vmem [shape: f32[8,1], index: 5, kind: input, shape index: {}]
  %s6 = inlined_call_operand.vmem [shape: f32[8,8], index: 6, kind: input, shape index: {}]
  %s7 = inlined_call_operand.vmem [shape: f32[8,1], index: 7, kind: input, shape index: {}]
  %s8 = inlined_call_operand.hbm [shape: f32[2,8,16], index: 8, kind: output, shape index: {}]
  %s9 = sld [smem:[#allocation0]]
  $region65: #{tpu_custom_call.1} parent=0
    _
  %s11 = ssub.s32 1, %s9
  %s12 = scalar_select 0, %s11, %s9
  $region1: #{tpu_custom_call.1} parent=0
    #allocation2 [shape = 'u8[8192]{0}', space=vmem, size = 0x2000, scoped, tag = 'output window, operand 0']
    #allocation3 [shape = 's32[2]{0}', space=sflag, size = 0x8, scoped, tag = 'scoped memory for tpu_custom_call.1']
    %13 = vsyncpa [#allocation3], 0
    %s14 = scalar_lea.sflag [#allocation3], 1
    %15 = vsyncpa %s14, 0
    loop: start=0, step=1, limit=4
    $region2: #{tpu_custom_call.1} parent=1 // loop_pre_header
      _
    $region3: #{tpu_custom_call.1} parent=1 // loop_header
      %s17 = sphi 0, %s21
      %p18 = scmp.ge.s32.totalorder %s17, 4
      %s24 = sphi 0, %s36
      %s25 = sphi 0, %s32
      %s26 = sphi 0, %s24
      %s27 = sphi 0, %s25
      %s28 = sphi 0, %s26
      %s29 = sphi 0, %s27
      %s41 = sphi 0, %s43
      %s44 = sphi 0, %s41
      %s45 = sphi 0, %s44
      %s61 = sphi 0, %s45
      %s67 = sphi 0, %s69
      %s70 = sphi 0, %s67
      %s71 = sphi 0, %s70
      %s87 = sphi 0, %s71
      %s93 = sphi 0, %s95
      %s96 = sphi 0, %s93
      %s97 = sphi 0, %s96
      %s113 = sphi 0, %s97
      %s117 = sphi 0, %s117
      %s119 = sphi 0, %s117
      %s120 = sphi 0, %s119
      %s134 = sphi 0, %s120
      %s138 = sphi 0, %s138
      %s140 = sphi 0, %s138
      %s141 = sphi 0, %s140
      %s155 = sphi 0, %s141
      %s159 = sphi 0, %s159
      %s161 = sphi 0, %s159
      %s162 = sphi 0, %s161
      %s176 = sphi 0, %s162
      %s180 = sphi 0, %s180
      %s182 = sphi 0, %s180
      %s183 = sphi 0, %s182
      %s197 = sphi 0, %s183
      %s201 = sphi 0, %s201
      %s203 = sphi 0, %s201
      %s204 = sphi 0, %s203
      %s218 = sphi 0, %s204
      %s226 = sphi 0, %s228
      %s229 = sphi 0, %s226
      %s230 = sphi 0, %s229
      %s246 = sphi 0, %s230
    $region4: #{tpu_custom_call.1} parent=1 // loop_header_branch
      %20 = sbr.rel (%p18) target = $region8
    $region5: #{tpu_custom_call.1} parent=1 // loop_body
      %s22 = ssub.s32 %s17, 1
      %s23 = ssub.s32 %s17, 2
      %s30 = sadd.s32 1, %s25
      %p31 = scmp.ge.s32.totalorder %s30, 1
      %s32 = scalar_select %p31, 0, %s30
      %s33 = sadd.s32 1, %s24
      %s34 = scalar_select %p31, %s33, %s24
      %p35 = scmp.ge.s32.totalorder %s34, 2
      %s36 = scalar_select %p35, 0, %s34
      %s37 = ssub.s32 %s24, %s36
      %s38 = ssub.s32 %s25, %s32
      %s39 = sor.u32 %s37, %s38
      %p40 = scmp.eq.s32.totalorder %s39, 0
      %s42 = sadd.s32 %s41, 1
      %s43 = scalar_select %p40, %s41, %s42
      %p46 = pneg %p40
      %p47 = scmp.eq.s32.totalorder %s17, 1
      %p48 = por %p46, %p47
      %p49 = scmp.ne.s32.totalorder %s41, %s44
      %p50 = scmp.eq.s32.totalorder %s17, 0
      %p51 = por %p49, %p50
      %p52 = scmp.ne.s32.totalorder %s41, %s44
      %p53 = scmp.eq.s32.totalorder %s22, 1
      %p54 = por %p52, %p53
      %p55 = scmp.ne.s32.totalorder %s44, %s45
      %p56 = scmp.eq.s32.totalorder %s22, 0
      %p57 = por %p55, %p56
      %p58 = scmp.ne.s32.totalorder %s44, %s45
      %p59 = scmp.eq.s32.totalorder %s23, 1
      %p60 = por %p58, %p59
      %p62 = scmp.ne.s32.totalorder %s45, %s61
      %p63 = scmp.eq.s32.totalorder %s23, 0
      %p64 = por %p62, %p63
      %s65 = ssub.s32 %s24, %s36
      %p66 = scmp.eq.s32.totalorder %s65, 0
      %s68 = sadd.s32 %s67, 1
      %s69 = scalar_select %p66, %s67, %s68
      %p72 = pneg %p66
      %p73 = scmp.eq.s32.totalorder %s17, 1
      %p74 = por %p72, %p73
      %p75 = scmp.ne.s32.totalorder %s67, %s70
      %p76 = scmp.eq.s32.totalorder %s17, 0
      %p77 = por %p75, %p76
      %p78 = scmp.ne.s32.totalorder %s67, %s70
      %p79 = scmp.eq.s32.totalorder %s22, 1
      %p80 = por %p78, %p79
      %p81 = scmp.ne.s32.totalorder %s70, %s71
      %p82 = scmp.eq.s32.totalorder %s22, 0
      %p83 = por %p81, %p82
      %p84 = scmp.ne.s32.totalorder %s70, %s71
      %p85 = scmp.eq.s32.totalorder %s23, 1
      %p86 = por %p84, %p85
      %p88 = scmp.ne.s32.totalorder %s71, %s87
      %p89 = scmp.eq.s32.totalorder %s23, 0
      %p90 = por %p88, %p89
      %s91 = ssub.s32 %s24, %s36
      %p92 = scmp.eq.s32.totalorder %s91, 0
      %s94 = sadd.s32 %s93, 1
      %s95 = scalar_select %p92, %s93, %s94
      %p98 = pneg %p92
      %p99 = scmp.eq.s32.totalorder %s17, 1
      %p100 = por %p98, %p99
      %p101 = scmp.ne.s32.totalorder %s93, %s96
      %p102 = scmp.eq.s32.totalorder %s17, 0
      %p103 = por %p101, %p102
      %p104 = scmp.ne.s32.totalorder %s93, %s96
      %p105 = scmp.eq.s32.totalorder %s22, 1
      %p106 = por %p104, %p105
      %p107 = scmp.ne.s32.totalorder %s96, %s97
      %p108 = scmp.eq.s32.totalorder %s22, 0
      %p109 = por %p107, %p108
      %p110 = scmp.ne.s32.totalorder %s96, %s97
      %p111 = scmp.eq.s32.totalorder %s23, 1
      %p112 = por %p110, %p111
      %p114 = scmp.ne.s32.totalorder %s97, %s113
      %p115 = scmp.eq.s32.totalorder %s23, 0
      %p116 = por %p114, %p115
      %s118 = sadd.s32 %s117, 1
      %p121 = scmp.eq.s32.totalorder %s17, 1
      %p122 = scmp.ne.s32.totalorder %s117, %s119
      %p123 = scmp.eq.s32.totalorder %s17, 0
      %p124 = por %p122, %p123
      %p125 = scmp.ne.s32.totalorder %s117, %s119
      %p126 = scmp.eq.s32.totalorder %s22, 1
      %p127 = por %p125, %p126
      %p128 = scmp.ne.s32.totalorder %s119, %s120
      %p129 = scmp.eq.s32.totalorder %s22, 0
      %p130 = por %p128, %p129
      %p131 = scmp.ne.s32.totalorder %s119, %s120
      %p132 = scmp.eq.s32.totalorder %s23, 1
      %p133 = por %p131, %p132
      %p135 = scmp.ne.s32.totalorder %s120, %s134
      %p136 = scmp.eq.s32.totalorder %s23, 0
      %p137 = por %p135, %p136
      %s139 = sadd.s32 %s138, 1
      %p142 = scmp.eq.s32.totalorder %s17, 1
      %p143 = scmp.ne.s32.totalorder %s138, %s140
      %p144 = scmp.eq.s32.totalorder %s17, 0
      %p145 = por %p143, %p144
      %p146 = scmp.ne.s32.totalorder %s138, %s140
      %p147 = scmp.eq.s32.totalorder %s22, 1
      %p148 = por %p146, %p147
      %p149 = scmp.ne.s32.totalorder %s140, %s141
      %p150 = scmp.eq.s32.totalorder %s22, 0
      %p151 = por %p149, %p150
      %p152 = scmp.ne.s32.totalorder %s140, %s141
      %p153 = scmp.eq.s32.totalorder %s23, 1
      %p154 = por %p152, %p153
      %p156 = scmp.ne.s32.totalorder %s141, %s155
      %p157 = scmp.eq.s32.totalorder %s23, 0
      %p158 = por %p156, %p157
      %s160 = sadd.s32 %s159, 1
      %p163 = scmp.eq.s32.totalorder %s17, 1
      %p164 = scmp.ne.s32.totalorder %s159, %s161
      %p165 = scmp.eq.s32.totalorder %s17, 0
      %p166 = por %p164, %p165
      %p167 = scmp.ne.s32.totalorder %s159, %s161
      %p168 = scmp.eq.s32.totalorder %s22, 1
      %p169 = por %p167, %p168
      %p170 = scmp.ne.s32.totalorder %s161, %s162
      %p171 = scmp.eq.s32.totalorder %s22, 0
      %p172 = por %p170, %p171
      %p173 = scmp.ne.s32.totalorder %s161, %s162
      %p174 = scmp.eq.s32.totalorder %s23, 1
      %p175 = por %p173, %p174
      %p177 = scmp.ne.s32.totalorder %s162, %s176
      %p178 = scmp.eq.s32.totalorder %s23, 0
      %p179 = por %p177, %p178
      %s181 = sadd.s32 %s180, 1
      %p184 = scmp.eq.s32.totalorder %s17, 1
      %p185 = scmp.ne.s32.totalorder %s180, %s182
      %p186 = scmp.eq.s32.totalorder %s17, 0
      %p187 = por %p185, %p186
      %p188 = scmp.ne.s32.totalorder %s180, %s182
      %p189 = scmp.eq.s32.totalorder %s22, 1
      %p190 = por %p188, %p189
      %p191 = scmp.ne.s32.totalorder %s182, %s183
      %p192 = scmp.eq.s32.totalorder %s22, 0
      %p193 = por %p191, %p192
      %p194 = scmp.ne.s32.totalorder %s182, %s183
      %p195 = scmp.eq.s32.totalorder %s23, 1
      %p196 = por %p194, %p195
      %p198 = scmp.ne.s32.totalorder %s183, %s197
      %p199 = scmp.eq.s32.totalorder %s23, 0
      %p200 = por %p198, %p199
      %s202 = sadd.s32 %s201, 1
      %p205 = scmp.eq.s32.totalorder %s17, 1
      %p206 = scmp.ne.s32.totalorder %s201, %s203
      %p207 = scmp.eq.s32.totalorder %s17, 0
      %p208 = por %p206, %p207
      %p209 = scmp.ne.s32.totalorder %s201, %s203
      %p210 = scmp.eq.s32.totalorder %s22, 1
      %p211 = por %p209, %p210
      %p212 = scmp.ne.s32.totalorder %s203, %s204
      %p213 = scmp.eq.s32.totalorder %s22, 0
      %p214 = por %p212, %p213
      %p215 = scmp.ne.s32.totalorder %s203, %s204
      %p216 = scmp.eq.s32.totalorder %s23, 1
      %p217 = por %p215, %p216
      %p219 = scmp.ne.s32.totalorder %s204, %s218
      %p220 = scmp.eq.s32.totalorder %s23, 0
      %p221 = por %p219, %p220
      %s222 = ssub.s32 %s24, %s36
      %s223 = ssub.s32 %s25, %s32
      %s224 = sor.u32 %s222, %s223
      %p225 = scmp.eq.s32.totalorder %s224, 0
      %s227 = sadd.s32 %s226, 1
      %s228 = scalar_select %p225, %s226, %s227
      %p231 = pneg %p225
      %p232 = scmp.eq.s32.totalorder %s17, 1
      %p233 = por %p231, %p232
      %p234 = scmp.ne.s32.totalorder %s226, %s229
      %p235 = scmp.eq.s32.totalorder %s17, 0
      %p236 = por %p234, %p235
      %p237 = scmp.ne.s32.totalorder %s226, %s229
      %p238 = scmp.eq.s32.totalorder %s22, 1
      %p239 = por %p237, %p238
      %p240 = scmp.ne.s32.totalorder %s229, %s230
      %p241 = scmp.eq.s32.totalorder %s22, 0
      %p242 = por %p240, %p241
      %p243 = scmp.ne.s32.totalorder %s229, %s230
      %p244 = scmp.eq.s32.totalorder %s23, 1
      %p245 = por %p243, %p244
      %p247 = scmp.ne.s32.totalorder %s230, %s246
      %p248 = scmp.eq.s32.totalorder %s23, 0
      %p249 = por %p247, %p248
      %p250 = scmp.le.s32.totalorder 1, %s17
      %p251 = scmp.lt.s32.totalorder %s17, 3
      %p252 = pnand %p250, %p251
      %p253 = pneg %p252
      // Predicated region
      $region9: #{tpu_custom_call.1} parent=5 // pred_check
        _
      $region10: #{tpu_custom_call.1} parent=5 // pred_check_branch
        %255 = sbr.rel (%p252) target = $region12
      $region11: #{tpu_custom_call.1} parent=5 // pred_region
        %s256 = ssub.s32 %s17, 1
        // Predicated region
        $region13: #{tpu_custom_call.1} parent=11 // pred_check
          %p257 = pneg %p130
        $region14: #{tpu_custom_call.1} parent=11 // pred_check_branch
          %259 = sbr.rel (%p257) target = $region16
        $region15: #{tpu_custom_call.1} parent=11 // pred_region
          _
        $region16: #{tpu_custom_call.1} parent=11 // pred_fallthru
          _
        // Predicated region
        $region17: #{tpu_custom_call.1} parent=11 // pred_check
          %p260 = pneg %p151
        $region18: #{tpu_custom_call.1} parent=11 // pred_check_branch
          %262 = sbr.rel (%p260) target = $region20
        $region19: #{tpu_custom_call.1} parent=11 // pred_region
          _
        $region20: #{tpu_custom_call.1} parent=11 // pred_fallthru
          _
        // Predicated region
        $region21: #{tpu_custom_call.1} parent=11 // pred_check
          %p263 = pneg %p172
        $region22: #{tpu_custom_call.1} parent=11 // pred_check_branch
          %265 = sbr.rel (%p263) target = $region24
        $region23: #{tpu_custom_call.1} parent=11 // pred_region
          _
        $region24: #{tpu_custom_call.1} parent=11 // pred_fallthru
          _
        // Predicated region
        $region25: #{tpu_custom_call.1} parent=11 // pred_check
          %p266 = pneg %p193
        $region26: #{tpu_custom_call.1} parent=11 // pred_check_branch
          %268 = sbr.rel (%p266) target = $region28
        $region27: #{tpu_custom_call.1} parent=11 // pred_region
          _
        $region28: #{tpu_custom_call.1} parent=11 // pred_fallthru
          _
        // Predicated region
        $region29: #{tpu_custom_call.1} parent=11 // pred_check
          %p269 = pneg %p214
        $region30: #{tpu_custom_call.1} parent=11 // pred_check_branch
          %271 = sbr.rel (%p269) target = $region32
        $region31: #{tpu_custom_call.1} parent=11 // pred_region
          _
        $region32: #{tpu_custom_call.1} parent=11 // pred_fallthru
          _
      $region12: #{tpu_custom_call.1} parent=5 // pred_fallthru
        _
      %p272 = scmp.lt.s32.totalorder %s17, 2
      // Predicated region
      $region33: #{tpu_custom_call.1} parent=5 // pred_check
        %p273 = pneg %p272
      $region34: #{tpu_custom_call.1} parent=5 // pred_check_branch
        %275 = sbr.rel (%p273) target = $region36
      $region35: #{tpu_custom_call.1} parent=5 // pred_region
        // Predicated region
        $region37: #{tpu_custom_call.1} parent=35 // pred_check
          %p276 = pneg %p51
        $region38: #{tpu_custom_call.1} parent=35 // pred_check_branch
          %278 = sbr.rel (%p276) target = $region40
        $region39: #{tpu_custom_call.1} parent=35 // pred_region
          %p279 = scmp.lt.s32.totalorder %s24, 1
          %s280 = scalar_select %p279, %s24, 1
          %p281 = scmp.lt.s32.totalorder %s25, 0
          %s282 = scalar_select %p281, %s25, 0
          %s283 = sadd.s32 %s282, %s280
          %s284 = smul.addr %s283, 4
          %s285 = scalar_lea.vmem %s0, %s284
        $region40: #{tpu_custom_call.1} parent=35 // pred_fallthru
          _
        // Predicated region
        $region41: #{tpu_custom_call.1} parent=35 // pred_check
          %p286 = pneg %p77
        $region42: #{tpu_custom_call.1} parent=35 // pred_check_branch
          %288 = sbr.rel (%p286) target = $region44
        $region43: #{tpu_custom_call.1} parent=35 // pred_region
          %p289 = scmp.lt.s32.totalorder %s24, 1
          %s290 = scalar_select %p289, %s24, 1
          %s291 = smul.addr %s290, 4
          %s292 = scalar_lea.vmem %s1, %s291
        $region44: #{tpu_custom_call.1} parent=35 // pred_fallthru
          _
        // Predicated region
        $region45: #{tpu_custom_call.1} parent=35 // pred_check
          %p293 = pneg %p103
        $region46: #{tpu_custom_call.1} parent=35 // pred_check_branch
          %295 = sbr.rel (%p293) target = $region48
        $region47: #{tpu_custom_call.1} parent=35 // pred_region
          %p296 = scmp.lt.s32.totalorder %s24, 1
          %s297 = scalar_select %p296, %s24, 1
          %s298 = scalar_lea.vmem %s2, %s297
        $region48: #{tpu_custom_call.1} parent=35 // pred_fallthru
          _
      $region36: #{tpu_custom_call.1} parent=5 // pred_fallthru
        _
      %p299 = scmp.le.s32.totalorder 1, %s17
      %p300 = scmp.lt.s32.totalorder %s17, 3
      %p301 = pnand %p299, %p300
      %p302 = pneg %p301
      // Predicated region
      $region49: #{tpu_custom_call.1} parent=5 // pred_check
        _
      $region50: #{tpu_custom_call.1} parent=5 // pred_check_branch
        %304 = sbr.rel (%p301) target = $region52
      $region51: #{tpu_custom_call.1} parent=5 // pred_region
        %s305 = ssub.s32 %s17, 1
        %p306 = scmp.lt.s32.totalorder %s26, 1
        %s307 = scalar_select %p306, %s26, 1
        %p308 = scmp.lt.s32.totalorder %s27, 0
        %s309 = scalar_select %p308, %s27, 0
        %s310 = sadd.s32 %s309, %s307
        %s311 = smul.addr %s310, 4
        %s312 = scalar_lea.vmem %s0, %s311
        %p313 = pneg %p57
        %p314 = pneg %p54
        %p315 = scmp.lt.s32.totalorder %s26, 1
        %s316 = scalar_select %p315, %s26, 1
        %s317 = smul.addr %s316, 4
        %s318 = scalar_lea.vmem %s1, %s317
        %p319 = pneg %p83
        %p320 = pneg %p80
        %p321 = scmp.lt.s32.totalorder %s26, 1
        %s322 = scalar_select %p321, %s26, 1
        %s323 = scalar_lea.vmem %s2, %s322
        %p324 = pneg %p109
        %p325 = pneg %p106
        %p326 = pneg %p130
        %p327 = pneg %p127
        %p328 = pneg %p151
        %p329 = pneg %p148
        %p330 = pneg %p172
        %p331 = pneg %p169
        %p332 = pneg %p193
        %p333 = pneg %p190
        %p334 = pneg %p214
        %p335 = pneg %p211
        %p336 = pneg %p242
        %p337 = pneg %p239
        %s338 = sand.u32 %s229, 1
        %s339 = scalar_lea.sflag [#allocation3], %s338
        %s340 = sand.u32 %s229, 1
        %s341 = smul.addr %s340, 8
        %s342 = scalar_lea.vmem [#allocation2], %s341
        %p343 = scmp.lt.s32.totalorder %s26, 1
        %s344 = scalar_select %p343, %s26, 1
        %p345 = scmp.lt.s32.totalorder %s27, 0
        %s346 = scalar_select %p345, %s27, 0
        %s347 = sadd.s32 %s346, %s344
        %s348 = smul.addr %s347, 4
        %s349 = scalar_lea.vmem %s0, %s348
        %p350 = scmp.lt.s32.totalorder %s26, 1
        %s351 = scalar_select %p350, %s26, 1
        %s352 = smul.addr %s351, 4
        %s353 = scalar_lea.vmem %s1, %s352
        %p354 = scmp.lt.s32.totalorder %s26, 1
        %s355 = scalar_select %p354, %s26, 1
        %s356 = scalar_lea.vmem %s2, %s355
        %v358 = vld [vmem:[%s349] sm:$0x7]
        %v359 = vld [vmem:[%s353] sm:$0x7]
        %v360 = vld [vmem:[%s356] sm:$0x1]
        %361 = vxpose.xlu0.b32.start [1/16] %v358, 128
        %362 = vxpose.xlu0.b32.cont [2/16] 0.0, 128
        %363 = vxpose.xlu0.b32.cont [3/16] 0.0, 128
        %364 = vxpose.xlu0.b32.cont [4/16] 0.0, 128
        %365 = vxpose.xlu0.b32.cont [5/16] 0.0, 128
        %366 = vxpose.xlu0.b32.cont [6/16] 0.0, 128
        %367 = vxpose.xlu0.b32.cont [7/16] 0.0, 128
        %368 = vxpose.xlu0.b32.cont [8/16] 0.0, 128
        %369 = vxpose.xlu0.b32.cont [9/16] 0.0, 128
        %370 = vxpose.xlu0.b32.cont [10/16] 0.0, 128
        %371 = vxpose.xlu0.b32.cont [11/16] 0.0, 128
        %372 = vxpose.xlu0.b32.cont [12/16] 0.0, 128
        %373 = vxpose.xlu0.b32.cont [13/16] 0.0, 128
        %374 = vxpose.xlu0.b32.cont [14/16] 0.0, 128
        %375 = vxpose.xlu0.b32.cont [15/16] 0.0, 128
        %376 = vxpose.xlu0.b32.end [16/16] 0.0, 128
        %v377 = vpop.trf.xlu0
        %v378 = vpop.trf.xlu0
        %v379 = vpop.trf.xlu0
        %v380 = vpop.trf.xlu0
        %v381 = vpop.trf.xlu0
        %v382 = vpop.trf.xlu0
        %v383 = vpop.trf.xlu0
        %v384 = vpop.trf.xlu0
        %v385 = vpop.trf.xlu0
        %v386 = vpop.trf.xlu0
        %v387 = vpop.trf.xlu0
        %v388 = vpop.trf.xlu0
        %v389 = vpop.trf.xlu0
        %v390 = vpop.trf.xlu0
        %v391 = vpop.trf.xlu0
        %v392 = vpop.trf.xlu0
        %vm393 = vcmask 23552
        %v395 = vsel %vm393, %v377, 0
        %v398 = vsel %vm393, %v378, 0
        %vm400 = vcmask 1042432
        %v402 = vsel %vm400, %v359, 0
        %404 = vmatprep.subr.mxu0 0.0
        %405 = vmatpush1.msra.mxu0 0.0
        %406 = vmatprep.subr.mxu0 0.0
        %407 = vmatpush1.msra.mxu0 0.0
        %408 = vmatprep.subr.mxu0 0.0
        %409 = vmatpush1.msra.mxu0 0.0
        %410 = vmatprep.subr.mxu0 0.0
        %411 = vmatpush1.msra.mxu0 0.0
        %412 = vmatprep.subr.mxu0 0.0
        %413 = vmatpush1.msra.mxu0 0.0
        %414 = vmatprep.subr.mxu0 0.0
        %415 = vmatpush1.msra.mxu0 0.0
        %416 = vmatprep.subr.mxu0 0.0
        %417 = vmatpush1.msra.mxu0 0.0
        %418 = vmatprep.subr.mxu0 0.0
        %419 = vmatpush1.msra.mxu0 0.0
        %420 = vmatprep.subr.mxu0 0.0
        %421 = vmatpush1.msra.mxu0 0.0
        %422 = vmatprep.subr.mxu0 0.0
        %423 = vmatpush1.msra.mxu0 0.0
        %424 = vmatprep.subr.mxu0 0.0
        %425 = vmatpush1.msra.mxu0 0.0
        %426 = vmatprep.subr.mxu0 0.0
        %427 = vmatpush1.msra.mxu0 0.0
        %428 = vmatprep.subr.mxu0 0.0
        %429 = vmatpush1.msra.mxu0 0.0
        %430 = vmatprep.subr.mxu0 0.0
        %431 = vmatpush1.msra.mxu0 0.0
        %432 = vmatprep.subr.mxu0 0.0
        %433 = vmatpush1.msra.mxu0 0.0
        %434 = vmatprep.subr.mxu0 0.0
        %435 = vmatpush1.msra.mxu0 %v402
        %436 = vmatprep.subr.mxu0 0.0
        %437 = vmatpush2.msra.mxu0 0.0
        %438 = vmatprep.subr.mxu0 0.0
        %439 = vmatpush2.msra.mxu0 0.0
        %440 = vmatprep.subr.mxu0 0.0
        %441 = vmatpush2.msra.mxu0 0.0
        %442 = vmatprep.subr.mxu0 0.0
        %443 = vmatpush2.msra.mxu0 0.0
        %444 = vmatprep.subr.mxu0 0.0
        %445 = vmatpush2.msra.mxu0 0.0
        %446 = vmatprep.subr.mxu0 0.0
        %447 = vmatpush2.msra.mxu0 0.0
        %448 = vmatprep.subr.mxu0 0.0
        %449 = vmatpush2.msra.mxu0 0.0
        %450 = vmatprep.subr.mxu0 0.0
        %451 = vmatpush2.msra.mxu0 0.0
        %452 = vmatprep.subr.mxu0 0.0
        %453 = vmatpush2.msra.mxu0 0.0
        %454 = vmatprep.subr.mxu0 0.0
        %455 = vmatpush2.msra.mxu0 0.0
        %456 = vmatprep.subr.mxu0 0.0
        %457 = vmatpush2.msra.mxu0 0.0
        %458 = vmatprep.subr.mxu0 0.0
        %459 = vmatpush2.msra.mxu0 0.0
        %460 = vmatprep.subr.mxu0 0.0
        %461 = vmatpush2.msra.mxu0 0.0
        %462 = vmatprep.subr.mxu0 0.0
        %463 = vmatpush2.msra.mxu0 0.0
        %464 = vmatprep.subr.mxu0 0.0
        %465 = vmatpush2.msra.mxu0 0.0
        %466 = vmatprep.subr.mxu0 0.0
        %467 = vmatpush2.msra.mxu0 0.0
        %468 = vmatprep.mubr.f32.mxu0 0.0
        %469 = vmatmul.mubr.f32.gmra.mxu0 %v395
        %v470 = vpop.f32.mrf.mxu0
        %v471 = vadd.f32 0.0, %v470
        %v472 = vpop.f32.mrf.mxu0
        %473 = vmatprep.mubr.f32.mxu0 0.0
        %474 = vmatmul.mubr.f32.gmra.mxu0 %v398
        %v475 = vpop.f32.mrf.mxu0
        %v476 = vadd.f32 0.0, %v475
        %v477 = vpop.f32.mrf.mxu0
        %478 = vdwg.mxu0
        %v479 = vmul.f32 %v471, 2.0
        %v480 = vmul.f32 %v476, 2.0
        %v482 = vlaneseq
        %v483 = vshrl.u32 %v482, 7
        %v484 = vsub.s32 0, %v483
        %v485 = vrot.slane %v360, %v484
        %v487 = vsub.f32 %v479, %v485
        %v488 = vsub.f32 %v480, %v485
        %v489 = vpack.c.bf16 %v359, %v359
        %v490 = vld [vmem:[%s3] sm:$0xff]
        %v491 = vpack.c.bf16 %v490, %v490
        %v493 = vsel %vm393, %v491, 0
        %vm495 = vcmask 1040384
        %vm496 = vcmask 1041408
        %v497 = vsel %vm495, 4294967295, 65535
        %v498 = vsel %vm496, %v497, 0
        %v500 = vand.u32 %v489, %v498
        %502 = vmatprep.subr.bf16.mxu0 0
        %503 = vmatpush1.bf16.msra.mxu0 0
        %504 = vmatprep.subr.bf16.mxu0 0
        %505 = vmatpush1.bf16.msra.mxu0 0
        %506 = vmatprep.subr.bf16.mxu0 0
        %507 = vmatpush1.bf16.msra.mxu0 0
        %508 = vmatprep.subr.bf16.mxu0 0
        %509 = vmatpush1.bf16.msra.mxu0 0
        %510 = vmatprep.subr.bf16.mxu0 0
        %511 = vmatpush1.bf16.msra.mxu0 0
        %512 = vmatprep.subr.bf16.mxu0 0
        %513 = vmatpush1.bf16.msra.mxu0 0
        %514 = vmatprep.subr.bf16.mxu0 0
        %515 = vmatpush1.bf16.msra.mxu0 0
        %516 = vmatprep.subr.bf16.mxu0 0
        %517 = vmatpush1.bf16.msra.mxu0 %v500
        %518 = vmatprep.subr.bf16.mxu0 0
        %519 = vmatpush2.bf16.msra.mxu0 0
        %520 = vmatprep.subr.bf16.mxu0 0
        %521 = vmatpush2.bf16.msra.mxu0 0
        %522 = vmatprep.subr.bf16.mxu0 0
        %523 = vmatpush2.bf16.msra.mxu0 0
        %524 = vmatprep.subr.bf16.mxu0 0
        %525 = vmatpush2.bf16.msra.mxu0 0
        %526 = vmatprep.subr.bf16.mxu0 0
        %527 = vmatpush2.bf16.msra.mxu0 0
        %528 = vmatprep.subr.bf16.mxu0 0
        %529 = vmatpush2.bf16.msra.mxu0 0
        %530 = vmatprep.subr.bf16.mxu0 0
        %531 = vmatpush2.bf16.msra.mxu0 0
        %532 = vmatprep.subr.bf16.mxu0 0
        %533 = vmatpush2.bf16.msra.mxu0 0
        %534 = vmatprep.mubr.bf16.mxu0 0
        %535 = vmatmul.mubr.bf16.gmra.mxu0 %v493
        %v536 = vpop.f32.mrf.mxu0
        %v537 = vadd.f32 0.0, %v536
        %v538 = vpop.f32.mrf.mxu0
        %v539 = vpop.f32.mrf.mxu0
        %v540 = vpop.f32.mrf.mxu0
        %541 = vdwg.mxu0
        %v542 = vpack.c.bf16 %v537, %v537
        %v543 = vld [vmem:[%s4] sm:$0xff]
        %v544 = vpack.c.bf16 %v543, %v543
        %v545 = vpack.c.bf16 %v358, %v358
        %v546 = vld [vmem:[%s5] sm:$0xff]
        %548 = vset.pattern.permute.xlu0 0
        %549 = vperm.xlu0 %548, %v546
        %v550 = vpop.permute.xlu0 %549
        %v553 = vsel %vm393, %v544, 0
        %v556 = vand.u32 %v545, %v498
        %558 = vmatprep.subr.bf16.mxu0 0
        %559 = vmatpush1.bf16.msra.mxu0 0
        %560 = vmatprep.subr.bf16.mxu0 0
        %561 = vmatpush1.bf16.msra.mxu0 0
        %562 = vmatprep.subr.bf16.mxu0 0
        %563 = vmatpush1.bf16.msra.mxu0 0
        %564 = vmatprep.subr.bf16.mxu0 0
        %565 = vmatpush1.bf16.msra.mxu0 0
        %566 = vmatprep.subr.bf16.mxu0 0
        %567 = vmatpush1.bf16.msra.mxu0 0
        %568 = vmatprep.subr.bf16.mxu0 0
        %569 = vmatpush1.bf16.msra.mxu0 0
        %570 = vmatprep.subr.bf16.mxu0 0
        %571 = vmatpush1.bf16.msra.mxu0 0
        %572 = vmatprep.subr.bf16.mxu0 0
        %573 = vmatpush1.bf16.msra.mxu0 %v556
        %574 = vmatprep.subr.bf16.mxu0 0
        %575 = vmatpush2.bf16.msra.mxu0 0
        %576 = vmatprep.subr.bf16.mxu0 0
        %577 = vmatpush2.bf16.msra.mxu0 0
        %578 = vmatprep.subr.bf16.mxu0 0
        %579 = vmatpush2.bf16.msra.mxu0 0
        %580 = vmatprep.subr.bf16.mxu0 0
        %581 = vmatpush2.bf16.msra.mxu0 0
        %582 = vmatprep.subr.bf16.mxu0 0
        %583 = vmatpush2.bf16.msra.mxu0 0
        %584 = vmatprep.subr.bf16.mxu0 0
        %585 = vmatpush2.bf16.msra.mxu0 0
        %586 = vmatprep.subr.bf16.mxu0 0
        %587 = vmatpush2.bf16.msra.mxu0 0
        %588 = vmatprep.subr.bf16.mxu0 0
        %589 = vmatpush2.bf16.msra.mxu0 0
        %590 = vmatprep.mubr.bf16.mxu0 0
        %591 = vmatmul.mubr.bf16.gmra.mxu0 %v553
        %v592 = vpop.f32.mrf.mxu0
        %v593 = vadd.f32 %v550, %v592
        %v594 = vpop.f32.mrf.mxu0
        %v595 = vpop.f32.mrf.mxu0
        %v596 = vpop.f32.mrf.mxu0
        %597 = vdwg.mxu0
        %v598 = vlaneseq
        %v599 = vand.u32 %v598, 127
        %v600 = vcvt.s32.f32 %v599
        %vm601 = vcmask 130048
        %v602 = vsel %vm601, %v487, -inf
        %603 = vmax.xlane.f32.xlu0 %v602
        %v604 = vpop.xlane.xlu0 %603
        %v605 = vsel %vm601, %v488, -inf
        %606 = vmax.xlane.f32.xlu0 %v605
        %v607 = vpop.xlane.xlu0 %606
        %vm608 = vcmp.ge.f32.partialorder %v487, %v604
        %vm609 = vcmp.ge.f32.partialorder %v488, %v607
        %v610 = vsel %vm608, %v600, 16.0
        %v611 = vsel %vm609, %v600, 16.0
        %v612 = vsel %vm601, %v610, inf
        %613 = vmin.xlane.f32.xlu0 %v612
        %v614 = vpop.xlane.xlu0 %613
        %v615 = vsel %vm601, %v611, inf
        %616 = vmin.xlane.f32.xlu0 %v615
        %v617 = vpop.xlane.xlu0 %616
        %vm618 = vcmp.eq.f32.partialorder %v600, %v614
        %vm619 = vcmp.eq.f32.partialorder %v600, %v617
        %v620 = vsel %vm618, -inf, %v487
        %v621 = vsel %vm619, -inf, %v488
        %v622 = vsel %vm618, 1.0, 0.0
        %v623 = vsel %vm619, 1.0, 0.0
        %v624 = vpack.c.bf16 %v623, %v622
        %v626 = vsel %vm601, %v542, 0
        %v629 = vsel %vm601, %v624, 0
        %631 = vmatprep.subr.bf16.mxu0 0
        %632 = vmatpush1.bf16.xpose.msra.mxu0 0
        %633 = vmatprep.subr.bf16.mxu0 0
        %634 = vmatpush1.bf16.xpose.msra.mxu0 0
        %635 = vmatprep.subr.bf16.mxu0 0
        %636 = vmatpush1.bf16.xpose.msra.mxu0 0
        %637 = vmatprep.subr.bf16.mxu0 0
        %638 = vmatpush1.bf16.xpose.msra.mxu0 0
        %639 = vmatprep.subr.bf16.mxu0 0
        %640 = vmatpush1.bf16.xpose.msra.mxu0 0
        %641 = vmatprep.subr.bf16.mxu0 0
        %642 = vmatpush1.bf16.xpose.msra.mxu0 0
        %643 = vmatprep.subr.bf16.mxu0 0
        %644 = vmatpush1.bf16.xpose.msra.mxu0 0
        %645 = vmatprep.subr.bf16.mxu0 0
        %646 = vmatpush1.bf16.xpose.msra.mxu0 %v629
        %647 = vmatprep.subr.bf16.mxu0 0
        %648 = vmatpush2.bf16.xpose.msra.mxu0 0
        %649 = vmatprep.subr.bf16.mxu0 0
        %650 = vmatpush2.bf16.xpose.msra.mxu0 0
        %651 = vmatprep.subr.bf16.mxu0 0
        %652 = vmatpush2.bf16.xpose.msra.mxu0 0
        %653 = vmatprep.subr.bf16.mxu0 0
        %654 = vmatpush2.bf16.xpose.msra.mxu0 0
        %655 = vmatprep.subr.bf16.mxu0 0
        %656 = vmatpush2.bf16.xpose.msra.mxu0 0
        %657 = vmatprep.subr.bf16.mxu0 0
        %658 = vmatpush2.bf16.xpose.msra.mxu0 0
        %659 = vmatprep.subr.bf16.mxu0 0
        %660 = vmatpush2.bf16.xpose.msra.mxu0 0
        %661 = vmatprep.subr.bf16.mxu0 0
        %662 = vmatpush2.bf16.xpose.msra.mxu0 0
        %663 = vmatprep.mubr.bf16.mxu0 0
        %664 = vmatmul.mubr.bf16.gmra.mxu0 %v626
        %v665 = vpop.f32.mrf.mxu0
        %v666 = vadd.f32 %v593, %v665
        %v667 = vpop.f32.mrf.mxu0
        %v668 = vpop.f32.mrf.mxu0
        %v669 = vpop.f32.mrf.mxu0
        %670 = vdwg.mxu0
        %v671 = vsel %vm601, %v620, -inf
        %672 = vmax.xlane.f32.xlu0 %v671
        %v673 = vpop.xlane.xlu0 %672
        %v674 = vsel %vm601, %v621, -inf
        %675 = vmax.xlane.f32.xlu0 %v674
        %v676 = vpop.xlane.xlu0 %675
        %vm677 = vcmp.ge.f32.partialorder %v620, %v673
        %vm678 = vcmp.ge.f32.partialorder %v621, %v676
        %v679 = vsel %vm677, %v600, 16.0
        %v680 = vsel %vm678, %v600, 16.0
        %v681 = vsel %vm601, %v679, inf
        %682 = vmin.xlane.f32.xlu0 %v681
        %v683 = vpop.xlane.xlu0 %682
        %v684 = vsel %vm601, %v680, inf
        %685 = vmin.xlane.f32.xlu0 %v684
        %v686 = vpop.xlane.xlu0 %685
        %vm687 = vcmp.eq.f32.partialorder %v600, %v683
        %vm688 = vcmp.eq.f32.partialorder %v600, %v686
        %v689 = vsel %vm687, -inf, %v620
        %v690 = vsel %vm688, -inf, %v621
        %v691 = vsel %vm687, 1.0, 0.0
        %v692 = vsel %vm688, 1.0, 0.0
        %v693 = vpack.c.bf16 %v692, %v691
        %v695 = vsel %vm601, %v693, 0
        %697 = vmatprep.subr.bf16.mxu0 0
        %698 = vmatpush1.bf16.xpose.msra.mxu0 0
        %699 = vmatprep.subr.bf16.mxu0 0
        %700 = vmatpush1.bf16.xpose.msra.mxu0 0
        %701 = vmatprep.subr.bf16.mxu0 0
        %702 = vmatpush1.bf16.xpose.msra.mxu0 0
        %703 = vmatprep.subr.bf16.mxu0 0
        %704 = vmatpush1.bf16.xpose.msra.mxu0 0
        %705 = vmatprep.subr.bf16.mxu0 0
        %706 = vmatpush1.bf16.xpose.msra.mxu0 0
        %707 = vmatprep.subr.bf16.mxu0 0
        %708 = vmatpush1.bf16.xpose.msra.mxu0 0
        %709 = vmatprep.subr.bf16.mxu0 0
        %710 = vmatpush1.bf16.xpose.msra.mxu0 0
        %711 = vmatprep.subr.bf16.mxu0 0
        %712 = vmatpush1.bf16.xpose.msra.mxu0 %v695
        %713 = vmatprep.subr.bf16.mxu0 0
        %714 = vmatpush2.bf16.xpose.msra.mxu0 0
        %715 = vmatprep.subr.bf16.mxu0 0
        %716 = vmatpush2.bf16.xpose.msra.mxu0 0
        %717 = vmatprep.subr.bf16.mxu0 0
        %718 = vmatpush2.bf16.xpose.msra.mxu0 0
        %719 = vmatprep.subr.bf16.mxu0 0
        %720 = vmatpush2.bf16.xpose.msra.mxu0 0
        %721 = vmatprep.subr.bf16.mxu0 0
        %722 = vmatpush2.bf16.xpose.msra.mxu0 0
        %723 = vmatprep.subr.bf16.mxu0 0
        %724 = vmatpush2.bf16.xpose.msra.mxu0 0
        %725 = vmatprep.subr.bf16.mxu0 0
        %726 = vmatpush2.bf16.xpose.msra.mxu0 0
        %727 = vmatprep.subr.bf16.mxu0 0
        %728 = vmatpush2.bf16.xpose.msra.mxu0 0
        %729 = vmatprep.mubr.bf16.mxu0 0
        %730 = vmatmul.mubr.bf16.gmra.mxu0 %v626
        %v731 = vpop.f32.mrf.mxu0
        %v732 = vadd.f32 %v593, %v731
        %v733 = vpop.f32.mrf.mxu0
        %v734 = vpop.f32.mrf.mxu0
        %v735 = vpop.f32.mrf.mxu0
        %736 = vdwg.mxu0
        %v737 = vsel %vm601, %v689, -inf
        %738 = vmax.xlane.f32.xlu0 %v737
        %v739 = vpop.xlane.xlu0 %738
        %v740 = vsel %vm601, %v690, -inf
        %741 = vmax.xlane.f32.xlu0 %v740
        %v742 = vpop.xlane.xlu0 %741
        %vm743 = vcmp.ge.f32.partialorder %v689, %v739
        %vm744 = vcmp.ge.f32.partialorder %v690, %v742
        %v745 = vsel %vm743, %v600, 16.0
        %v746 = vsel %vm744, %v600, 16.0
        %v747 = vsel %vm601, %v745, inf
        %748 = vmin.xlane.f32.xlu0 %v747
        %v749 = vpop.xlane.xlu0 %748
        %v750 = vsel %vm601, %v746, inf
        %751 = vmin.xlane.f32.xlu0 %v750
        %v752 = vpop.xlane.xlu0 %751
        %vm753 = vcmp.eq.f32.partialorder %v600, %v749
        %vm754 = vcmp.eq.f32.partialorder %v600, %v752
        %v755 = vsel %vm753, -inf, %v689
        %v756 = vsel %vm754, -inf, %v690
        %v757 = vsel %vm753, 1.0, 0.0
        %v758 = vsel %vm754, 1.0, 0.0
        %v759 = vpack.c.bf16 %v758, %v757
        %v761 = vsel %vm601, %v759, 0
        %763 = vmatprep.subr.bf16.mxu0 0
        %764 = vmatpush1.bf16.xpose.msra.mxu0 0
        %765 = vmatprep.subr.bf16.mxu0 0
        %766 = vmatpush1.bf16.xpose.msra.mxu0 0
        %767 = vmatprep.subr.bf16.mxu0 0
        %768 = vmatpush1.bf16.xpose.msra.mxu0 0
        %769 = vmatprep.subr.bf16.mxu0 0
        %770 = vmatpush1.bf16.xpose.msra.mxu0 0
        %771 = vmatprep.subr.bf16.mxu0 0
        %772 = vmatpush1.bf16.xpose.msra.mxu0 0
        %773 = vmatprep.subr.bf16.mxu0 0
        %774 = vmatpush1.bf16.xpose.msra.mxu0 0
        %775 = vmatprep.subr.bf16.mxu0 0
        %776 = vmatpush1.bf16.xpose.msra.mxu0 0
        %777 = vmatprep.subr.bf16.mxu0 0
        %778 = vmatpush1.bf16.xpose.msra.mxu0 %v761
        %779 = vmatprep.subr.bf16.mxu0 0
        %780 = vmatpush2.bf16.xpose.msra.mxu0 0
        %781 = vmatprep.subr.bf16.mxu0 0
        %782 = vmatpush2.bf16.xpose.msra.mxu0 0
        %783 = vmatprep.subr.bf16.mxu0 0
        %784 = vmatpush2.bf16.xpose.msra.mxu0 0
        %785 = vmatprep.subr.bf16.mxu0 0
        %786 = vmatpush2.bf16.xpose.msra.mxu0 0
        %787 = vmatprep.subr.bf16.mxu0 0
        %788 = vmatpush2.bf16.xpose.msra.mxu0 0
        %789 = vmatprep.subr.bf16.mxu0 0
        %790 = vmatpush2.bf16.xpose.msra.mxu0 0
        %791 = vmatprep.subr.bf16.mxu0 0
        %792 = vmatpush2.bf16.xpose.msra.mxu0 0
        %793 = vmatprep.subr.bf16.mxu0 0
        %794 = vmatpush2.bf16.xpose.msra.mxu0 0
        %795 = vmatprep.mubr.bf16.mxu0 0
        %796 = vmatmul.mubr.bf16.gmra.mxu0 %v626
        %v797 = vpop.f32.mrf.mxu0
        %v798 = vadd.f32 %v593, %v797
        %v799 = vpop.f32.mrf.mxu0
        %v800 = vpop.f32.mrf.mxu0
        %v801 = vpop.f32.mrf.mxu0
        %802 = vdwg.mxu0
        %v803 = vsel %vm601, %v755, -inf
        %804 = vmax.xlane.f32.xlu0 %v803
        %v805 = vpop.xlane.xlu0 %804
        %v806 = vsel %vm601, %v756, -inf
        %807 = vmax.xlane.f32.xlu0 %v806
        %v808 = vpop.xlane.xlu0 %807
        %vm809 = vcmp.ge.f32.partialorder %v755, %v805
        %vm810 = vcmp.ge.f32.partialorder %v756, %v808
        %v811 = vsel %vm809, %v600, 16.0
        %v812 = vsel %vm810, %v600, 16.0
        %v813 = vsel %vm601, %v811, inf
        %814 = vmin.xlane.f32.xlu0 %v813
        %v815 = vpop.xlane.xlu0 %814
        %v816 = vsel %vm601, %v812, inf
        %817 = vmin.xlane.f32.xlu0 %v816
        %v818 = vpop.xlane.xlu0 %817
        %vm819 = vcmp.eq.f32.partialorder %v600, %v815
        %vm820 = vcmp.eq.f32.partialorder %v600, %v818
        %v821 = vsel %vm819, 1.0, 0.0
        %v822 = vsel %vm820, 1.0, 0.0
        %v823 = vpack.c.bf16 %v822, %v821
        %v825 = vsel %vm601, %v823, 0
        %827 = vmatprep.subr.bf16.mxu0 0
        %828 = vmatpush1.bf16.xpose.msra.mxu0 0
        %829 = vmatprep.subr.bf16.mxu0 0
        %830 = vmatpush1.bf16.xpose.msra.mxu0 0
        %831 = vmatprep.subr.bf16.mxu0 0
        %832 = vmatpush1.bf16.xpose.msra.mxu0 0
        %833 = vmatprep.subr.bf16.mxu0 0
        %834 = vmatpush1.bf16.xpose.msra.mxu0 0
        %835 = vmatprep.subr.bf16.mxu0 0
        %836 = vmatpush1.bf16.xpose.msra.mxu0 0
        %837 = vmatprep.subr.bf16.mxu0 0
        %838 = vmatpush1.bf16.xpose.msra.mxu0 0
        %839 = vmatprep.subr.bf16.mxu0 0
        %840 = vmatpush1.bf16.xpose.msra.mxu0 0
        %841 = vmatprep.subr.bf16.mxu0 0
        %842 = vmatpush1.bf16.xpose.msra.mxu0 %v825
        %843 = vmatprep.subr.bf16.mxu0 0
        %844 = vmatpush2.bf16.xpose.msra.mxu0 0
        %845 = vmatprep.subr.bf16.mxu0 0
        %846 = vmatpush2.bf16.xpose.msra.mxu0 0
        %847 = vmatprep.subr.bf16.mxu0 0
        %848 = vmatpush2.bf16.xpose.msra.mxu0 0
        %849 = vmatprep.subr.bf16.mxu0 0
        %850 = vmatpush2.bf16.xpose.msra.mxu0 0
        %851 = vmatprep.subr.bf16.mxu0 0
        %852 = vmatpush2.bf16.xpose.msra.mxu0 0
        %853 = vmatprep.subr.bf16.mxu0 0
        %854 = vmatpush2.bf16.xpose.msra.mxu0 0
        %855 = vmatprep.subr.bf16.mxu0 0
        %856 = vmatpush2.bf16.xpose.msra.mxu0 0
        %857 = vmatprep.subr.bf16.mxu0 0
        %858 = vmatpush2.bf16.xpose.msra.mxu0 0
        %859 = vmatprep.mubr.bf16.mxu0 0
        %860 = vmatmul.mubr.bf16.gmra.mxu0 %v626
        %v861 = vpop.f32.mrf.mxu0
        %v862 = vadd.f32 %v593, %v861
        %v863 = vpop.f32.mrf.mxu0
        %v864 = vpop.f32.mrf.mxu0
        %v865 = vpop.f32.mrf.mxu0
        %866 = vdwg.mxu0
        %868 = vrot.lane.b32.xlu0 %v732, 16
        %v869 = vpop.permute.xlu0 %868
        %872 = vrot.lane.b32.xlu0 %v798, 32
        %v873 = vpop.permute.xlu0 %872
        %876 = vrot.lane.b32.xlu0 %v862, 48
        %v877 = vpop.permute.xlu0 %876
        %v879 = vsel %vm601, %v666, %v869
        %vm880 = vcmask 261120
        %v881 = vsel %vm880, %v879, %v873
        %vm882 = vcmask 392192
        %v883 = vsel %vm882, %v881, %v877
        %v884 = vmul.f32 %v883, 0.2
        %v885 = vmax.f32 %v883, %v884
        %v886 = vld [vmem:[%s6] sm:$0xff]
        %v887 = vpack.c.bf16 %v886, %v886
        %v888 = vpack.c.bf16 %v885, %v885
        %v889 = vld [vmem:[%s7] sm:$0xff]
        %891 = vset.pattern.permute.xlu0 0
        %892 = vperm.xlu0 %891, %v889
        %v893 = vpop.permute.xlu0 %892
        %vm895 = vcmask 64512
        %v897 = vsel %vm895, %v887, 0
        %vm899 = vcmask 1043456
        %v901 = vsel %vm899, %v888, 0
        %903 = vmatprep.subr.bf16.mxu0 0
        %904 = vmatpush1.bf16.msra.mxu0 0
        %905 = vmatprep.subr.bf16.mxu0 0
        %906 = vmatpush1.bf16.msra.mxu0 0
        %907 = vmatprep.subr.bf16.mxu0 0
        %908 = vmatpush1.bf16.msra.mxu0 0
        %909 = vmatprep.subr.bf16.mxu0 0
        %910 = vmatpush1.bf16.msra.mxu0 0
        %911 = vmatprep.subr.bf16.mxu0 0
        %912 = vmatpush1.bf16.msra.mxu0 0
        %913 = vmatprep.subr.bf16.mxu0 0
        %914 = vmatpush1.bf16.msra.mxu0 0
        %915 = vmatprep.subr.bf16.mxu0 0
        %916 = vmatpush1.bf16.msra.mxu0 0
        %917 = vmatprep.subr.bf16.mxu0 0
        %918 = vmatpush1.bf16.msra.mxu0 %v901
        %919 = vmatprep.subr.bf16.mxu0 0
        %920 = vmatpush2.bf16.msra.mxu0 0
        %921 = vmatprep.subr.bf16.mxu0 0
        %922 = vmatpush2.bf16.msra.mxu0 0
        %923 = vmatprep.subr.bf16.mxu0 0
        %924 = vmatpush2.bf16.msra.mxu0 0
        %925 = vmatprep.subr.bf16.mxu0 0
        %926 = vmatpush2.bf16.msra.mxu0 0
        %927 = vmatprep.subr.bf16.mxu0 0
        %928 = vmatpush2.bf16.msra.mxu0 0
        %929 = vmatprep.subr.bf16.mxu0 0
        %930 = vmatpush2.bf16.msra.mxu0 0
        %931 = vmatprep.subr.bf16.mxu0 0
        %932 = vmatpush2.bf16.msra.mxu0 0
        %933 = vmatprep.subr.bf16.mxu0 0
        %934 = vmatpush2.bf16.msra.mxu0 0
        %935 = vmatprep.mubr.bf16.mxu0 0
        %936 = vmatmul.mubr.bf16.gmra.mxu0 %v897
        %v937 = vpop.f32.mrf.mxu0
        %v938 = vadd.f32 %v893, %v937
        %v939 = vpop.f32.mrf.mxu0
        %v940 = vpop.f32.mrf.mxu0
        %v941 = vpop.f32.mrf.mxu0
        %942 = vdwg.mxu0
        %v943 = vmul.f32 %v938, 0.2
        %v944 = vmax.f32 %v938, %v943
        %946 = vrot.lane.b32.xlu0 %v944, 112
        %v947 = vpop.permute.xlu0 %946
        %v949 = vmax.f32 %v944, %v947
        %950 = vrot.lane.b32.xlu0 %v944, 96
        %v951 = vpop.permute.xlu0 %950
        %v953 = vmax.f32 %v949, %v951
        %954 = vrot.lane.b32.xlu0 %v944, 80
        %v955 = vpop.permute.xlu0 %954
        %v957 = vmax.f32 %v953, %v955
        %958 = vst.msk [vmem:[%s342] sm:$0xff] %vm601, %v957
        %s959 = sand.u32 %s229, 1
        %s960 = scalar_lea.sflag [#allocation3], %s959
        %s961 = sand.u32 %s229, 1
        %s962 = smul.addr %s961, 8
        %s963 = scalar_lea.vmem [#allocation2], %s962
        // Predicated region
        $region53: #{tpu_custom_call.1} parent=51 // pred_check
          %p964 = pneg %p239
        $region54: #{tpu_custom_call.1} parent=51 // pred_check_branch
          %966 = sbr.rel (%p964) target = $region56
        $region55: #{tpu_custom_call.1} parent=51 // pred_region
          %s968 = ssub.s32 128, 128
          %969 = vsyncadd %s960, %s968
          %s970 = sadd.s32 %s27, %s26
          %s971 = smul.addr %s970, 128
          %s972 = scalar_lea.hbm %s8, %s971
          %s974 = sshll.u32 %s963, 4
          %s975 = int_to_ptr.vmem [resolvable:$true] %s974
          %977 = dma.vmem_to_hbm [thread:$0]  %s975, 128, %s972, %s960
        $region56: #{tpu_custom_call.1} parent=51 // pred_fallthru
          _
      $region52: #{tpu_custom_call.1} parent=5 // pred_fallthru
        _
      %p978 = scmp.le.s32.totalorder 2, %s17
      // Predicated region
      $region57: #{tpu_custom_call.1} parent=5 // pred_check
        %p979 = pneg %p978
      $region58: #{tpu_custom_call.1} parent=5 // pred_check_branch
        %981 = sbr.rel (%p979) target = $region60
      $region59: #{tpu_custom_call.1} parent=5 // pred_region
        %s982 = ssub.s32 %s17, 2
        // Predicated region
        $region61: #{tpu_custom_call.1} parent=59 // pred_check
          %p983 = pneg %p245
        $region62: #{tpu_custom_call.1} parent=59 // pred_check_branch
          %985 = sbr.rel (%p983) target = $region64
        $region63: #{tpu_custom_call.1} parent=59 // pred_region
          %s986 = sand.u32 %s230, 1
          %s987 = scalar_lea.sflag [#allocation3], %s986
          %s988 = sand.u32 %s230, 1
          %s989 = smul.addr %s988, 8
          %s990 = scalar_lea.vmem [#allocation2], %s989
          %991 = dma.done %s987, 128
        $region64: #{tpu_custom_call.1} parent=59 // pred_fallthru
          _
      $region60: #{tpu_custom_call.1} parent=5 // pred_fallthru
        _
    $region6: #{tpu_custom_call.1} parent=1 // loop_footer
      %s21 = sadd.s32 1, %s17
    $region7: #{tpu_custom_call.1} parent=1 // loop_footer_branch
      %16 = sbr.rel target = $region3
    $region8: #{tpu_custom_call.1} parent=1 // loop_exit
      _
    %992 = vsyncpa [#allocation3], 1
    %s993 = scalar_lea.sflag [#allocation3], 1
    %994 = vsyncpa %s993, 1

</llo_original>
